<compile_context>
chip_gen: v5e
topology: v5e:2x2
jax: 0.10.0
libtpu: 0.0.40
codegen_flags: <defaults>
</compile_context>

<pallas_src>
import jax
import jax.numpy as jnp
from jax.experimental import pallas as pl
from jax.experimental.pallas import tpu as pltpu


_VMEM_LIMIT_BYTES = 48 * 1024 * 1024          # raised above the 16/32 MiB scoped defaults
_SMALL_PATH_BYTES = 24 * 1024 * 1024          # fused path only if ~4 copies of x fit here


# ---------------------------------------------------------------------------
# Fused single-step kernel (small feature maps)
# ---------------------------------------------------------------------------
def _se_fused_kernel(x_ref, w1a_ref, w1b_ref, w2_ref, o_ref):
    # x_ref:   (B, C, HW)   whole batch in one block
    # w1a_ref: (C, Cr)      first-linear weights acting on the avg-pooled half
    # w1b_ref: (C, Cr)      first-linear weights acting on the max-pooled half
    # w2_ref:  (Cr, C)      second-linear weights
    x = x_ref[...]                                    # keep input dtype (no full f32 copy)
    hw = x.shape[-1]

    # Squeeze: global avg + max pool over the spatial (lane) axis; accumulate in f32.
    # Block shape == full logical array shape, so the reductions see exactly HW lanes.
    sum_y = jnp.sum(x, axis=-1, dtype=jnp.float32)    # (B, C) f32 accumulation
    avg_y = sum_y * jnp.float32(1.0 / hw)
    max_y = jnp.max(x, axis=-1).astype(jnp.float32)   # (B, C)

    # Excitation MLP.  concat([avg, max]) @ W1  ==  avg @ W1a + max @ W1b
    h = (jnp.dot(avg_y, w1a_ref[...], preferred_element_type=jnp.float32)
         + jnp.dot(max_y, w1b_ref[...], preferred_element_type=jnp.float32))
    h = jnp.maximum(h, 0.0)                           # ReLU (Dropout = identity in eval)
    s = jax.nn.sigmoid(jnp.dot(h, w2_ref[...], preferred_element_type=jnp.float32))

    # Scale: x * y.expand_as(x), multiply in the input dtype.
    o_ref[...] = x * s.astype(x.dtype)[:, :, None]


def _se_block_fused(x_flat, w1a, w1b, w2):
    B, C, HW = x_flat.shape
    Cr = w2.shape[0]
    itemsize = x_flat.dtype.itemsize
    cost = pl.CostEstimate(
        flops=int(2 * B * (2 * C * Cr + Cr * C) + B * C * HW),
        transcendentals=int(B * C),
        bytes_accessed=int(2 * B * C * HW * itemsize + (2 * C * Cr + Cr * C) * 4),
    )
    return pl.pallas_call(
        _se_fused_kernel,
        out_shape=jax.ShapeDtypeStruct((B, C, HW), x_flat.dtype),
        grid=(1,),
        in_specs=[
            pl.BlockSpec((B, C, HW), lambda i: (0, 0, 0)),
            pl.BlockSpec((C, Cr), lambda i: (0, 0)),
            pl.BlockSpec((C, Cr), lambda i: (0, 0)),
            pl.BlockSpec((Cr, C), lambda i: (0, 0)),
        ],
        out_specs=pl.BlockSpec((B, C, HW), lambda i: (0, 0, 0)),
        compiler_params=pltpu.CompilerParams(
            dimension_semantics=("arbitrary",),
            vmem_limit_bytes=_VMEM_LIMIT_BYTES),
        cost_estimate=cost,
    )(x_flat, w1a, w1b, w2)


# ---------------------------------------------------------------------------
# Two-pass tiled path (large feature maps): pool -> (tiny MLP in JAX) -> scale
# ---------------------------------------------------------------------------
def _make_pool_kernel(hw_total, hw_tile):
    def pool_kernel(x_ref, sum_ref, max_ref):
        # x_ref: (1, C, hw_tile);  sum_ref/max_ref: (1, C, 1) f32 accumulators
        t = pl.program_id(1)
        x = x_ref[...].astype(jnp.float32)
        # Mask lanes past the true HW extent (partial last tile would otherwise
        # contaminate the max / mean).
        lane = jax.lax.broadcasted_iota(jnp.int32, x.shape, 2)
        valid = (t * hw_tile + lane) < hw_total
        psum = jnp.sum(jnp.where(valid, x, 0.0), axis=-1, keepdims=True)
        pmax = jnp.max(jnp.where(valid, x, -jnp.inf), axis=-1, keepdims=True)

        @pl.when(t == 0)
        def _():
            sum_ref[...] = psum
            max_ref[...] = pmax

        @pl.when(t != 0)
        def _():
            sum_ref[...] = sum_ref[...] + psum
            max_ref[...] = jnp.maximum(max_ref[...], pmax)

    return pool_kernel


def _scale_kernel(s_ref, x_ref, o_ref):
    # s_ref: (1, C, 1);  x_ref/o_ref: (1, C, hw_tile).  Multiply in input dtype.
    x = x_ref[...]
    o_ref[...] = x * s_ref[...].astype(x.dtype)


def _se_block_two_pass(x_flat, w1a, w1b, w2, *, hw_tile=512):
    B, C, HW = x_flat.shape
    itemsize = x_flat.dtype.itemsize

    # Lane-dense tiles: multiple of 128, last block dim, so stores stay unmasked.
    hw_tile = min(hw_tile, HW)
    if HW >= 128:
        hw_tile = max(128, (hw_tile // 128) * 128)
    else:
        hw_tile = HW
    n_t = pl.cdiv(HW, hw_tile)

    # ---- Pass 1: pooling (sum + max), accumulated over HW tiles ----
    sum_out, max_out = pl.pallas_call(
        _make_pool_kernel(HW, hw_tile),
        out_shape=(jax.ShapeDtypeStruct((B, C, 1), jnp.float32),
                   jax.ShapeDtypeStruct((B, C, 1), jnp.float32)),
        grid=(B, n_t),
        in_specs=[pl.BlockSpec((1, C, hw_tile), lambda b, t: (b, 0, t))],
        out_specs=(pl.BlockSpec((1, C, 1), lambda b, t: (b, 0, 0)),
                   pl.BlockSpec((1, C, 1), lambda b, t: (b, 0, 0))),
        compiler_params=pltpu.CompilerParams(
            dimension_semantics=("parallel", "arbitrary"),
            vmem_limit_bytes=_VMEM_LIMIT_BYTES),
        cost_estimate=pl.CostEstimate(
            flops=int(2 * B * C * HW), transcendentals=0,
            bytes_accessed=int(B * C * HW * itemsize)),
    )(x_flat)

    # ---- Pass 2: tiny excitation MLP, hoisted out of the per-tile loop ----
    avg_y = sum_out[:, :, 0] * jnp.float32(1.0 / HW)            # (B, C)
    max_y = max_out[:, :, 0]                                     # (B, C)
    h = jnp.maximum(avg_y @ w1a.astype(jnp.float32)
                    + max_y @ w1b.astype(jnp.float32), 0.0)
    s = jax.nn.sigmoid(h @ w2.astype(jnp.float32))               # (B, C) f32
    s3 = s[:, :, None]                                           # (B, C, 1)

    # ---- Pass 3: scale x by the gate, gridded over (B, HW tiles) ----
    out = pl.pallas_call(
        _scale_kernel,
        out_shape=jax.ShapeDtypeStruct((B, C, HW), x_flat.dtype),
        grid=(B, n_t),
        in_specs=[pl.BlockSpec((1, C, 1), lambda b, t: (b, 0, 0)),
                  pl.BlockSpec((1, C, hw_tile), lambda b, t: (b, 0, t))],
        out_specs=pl.BlockSpec((1, C, hw_tile), lambda b, t: (b, 0, t)),
        compiler_params=pltpu.CompilerParams(
            dimension_semantics=("parallel", "parallel"),
            vmem_limit_bytes=_VMEM_LIMIT_BYTES),
        cost_estimate=pl.CostEstimate(
            flops=int(B * C * HW), transcendentals=0,
            bytes_accessed=int(2 * B * C * HW * itemsize)),
    )(s3, x_flat)
    return out


# ---------------------------------------------------------------------------
# Public wrapper
# ---------------------------------------------------------------------------
def se_block(x, w1, w2, *, hw_tile=512, force_two_pass=False):
    """x: (B, C, H, W);  w1: (2C, Cr);  w2: (Cr, C).  Returns (B, C, H, W)."""
    B, C, H, W = x.shape
    HW = H * W
    x_flat = x.reshape(B, C, HW)
    w1a, w1b = w1[:C], w1[C:]                  # split for the concat-free matmul

    # ~4 resident copies of the x block (in + out, double-buffered) must fit VMEM.
    fits_small = (4 * B * C * HW * x.dtype.itemsize) <= _SMALL_PATH_BYTES
    if fits_small and not force_two_pass:
        out_flat = _se_block_fused(x_flat, w1a, w1b, w2)
    else:
        out_flat = _se_block_two_pass(x_flat, w1a, w1b, w2, hw_tile=hw_tile)
    return out_flat.reshape(B, C, H, W)


def se_block_reference(x, w1, w2):
    """Plain-JAX reference mirroring the PyTorch SEBlock forward (eval mode)."""
    B, C, H, W = x.shape
    xf = x.astype(jnp.float32)
    avg_y = jnp.mean(xf, axis=(2, 3))
    max_y = jnp.max(xf, axis=(2, 3))
    y = jnp.concatenate([avg_y, max_y], axis=1)        # (B, 2C)
    h = jnp.maximum(y @ w1, 0.0)                       # Linear(2C -> Cr, bias=False), ReLU
    s = jax.nn.sigmoid(h @ w2)                         # Linear(Cr -> C, bias=False), Sigmoid
    return (xf * s[:, :, None, None]).astype(x.dtype)


if __name__ == "__main__":
    # Small shapes consistent with the module: channels divisible by reduction=16.
    B, C, H, W = 2, 32, 16, 16
    reduction = 16
    Cr = C // reduction

    key = jax.random.PRNGKey(0)
    kx, k1, k2 = jax.random.split(key, 3)
    x = jax.random.normal(kx, (B, C, H, W), dtype=jnp.float32)

    # Deterministic bias-free Linear weights, stored as (in, out) so y = x @ W.
    lim1 = 1.0 / jnp.sqrt(2.0 * C)
    lim2 = 1.0 / jnp.sqrt(1.0 * Cr)
    w1 = jax.random.uniform(k1, (2 * C, Cr), minval=-lim1, maxval=lim1,
                            dtype=jnp.float32)
    w2 = jax.random.uniform(k2, (Cr, C), minval=-lim2, maxval=lim2,
                            dtype=jnp.float32)

    ref = se_block_reference(x, w1, w2)

    # Path 1: fused single-step kernel (small feature maps).
    out_small = jax.block_until_ready(se_block(x, w1, w2))
    assert out_small.shape == (B, C, H, W)
    assert jnp.allclose(out_small, ref, atol=1e-5, rtol=1e-5), "fused path mismatch"

    # Path 2: two-pass tiled kernels (large feature maps), forced here for testing.
    out_tiled = jax.block_until_ready(
        se_block(x, w1, w2, force_two_pass=True, hw_tile=128))
    assert out_tiled.shape == (B, C, H, W)
    assert jnp.allclose(out_tiled, ref, atol=1e-5, rtol=1e-5), "two-pass path mismatch"

    print("KERNEL_OK")
</pallas_src>

<mosaic_0001>
module attributes {stable_mosaic.version = 11 : i64} {
  func.func @_se_fused_kernel(%arg0: i32, %arg1: memref<2x32x256xf32, #tpu.memory_space<vmem>>, %arg2: memref<32x2xf32, #tpu.memory_space<vmem>>, %arg3: memref<32x2xf32, #tpu.memory_space<vmem>>, %arg4: memref<2x32xf32, #tpu.memory_space<vmem>>, %arg5: memref<2x32x256xf32, #tpu.memory_space<vmem>>) attributes {dimension_semantics = [#tpu.dimension_semantics<arbitrary>], iteration_bounds = array<i64: 1>, scalar_prefetch = 0 : i64, scratch_operands = 0 : i64, tpu.core_type = #tpu.core_type<tc>, window_params = [{pipeline_mode = #tpu.pipeline_mode<synchronous>, transform_indices = @transform_0, window_bounds = array<i64: 2, 32, 256>}, {pipeline_mode = #tpu.pipeline_mode<synchronous>, transform_indices = @transform_1, window_bounds = array<i64: 32, 2>}, {pipeline_mode = #tpu.pipeline_mode<synchronous>, transform_indices = @transform_2, window_bounds = array<i64: 32, 2>}, {pipeline_mode = #tpu.pipeline_mode<synchronous>, transform_indices = @transform_3, window_bounds = array<i64: 2, 32>}, {pipeline_mode = #tpu.pipeline_mode<synchronous>, transform_indices = @transform_4, window_bounds = array<i64: 2, 32, 256>}]} {
    %c0 = arith.constant 0 : index
    %c0_0 = arith.constant 0 : index
    %c0_1 = arith.constant 0 : index
    %0 = vector.load %arg1[%c0, %c0_0, %c0_1] : memref<2x32x256xf32, #tpu.memory_space<vmem>>, vector<2x32x256xf32>
    %cst = arith.constant dense<0.000000e+00> : vector<2x32xf32>
    %1 = vector.multi_reduction <add>, %0, %cst [2] : vector<2x32x256xf32> to vector<2x32xf32>
    %cst_2 = arith.constant 3.906250e-03 : f32
    %2 = vector.broadcast %cst_2 : f32 to vector<2x32xf32>
    %3 = arith.mulf %1, %2 : vector<2x32xf32>
    %cst_3 = arith.constant dense<0xFF800000> : vector<2x32xf32>
    %4 = vector.multi_reduction <maximumf>, %0, %cst_3 [2] : vector<2x32x256xf32> to vector<2x32xf32>
    %c0_4 = arith.constant 0 : index
    %c0_5 = arith.constant 0 : index
    %5 = vector.load %arg2[%c0_4, %c0_5] : memref<32x2xf32, #tpu.memory_space<vmem>>, vector<32x2xf32>
    %cst_6 = arith.constant dense<0.000000e+00> : vector<2x2xf32>
    %6 = tpu.matmul %3, %5, %cst_6 {dimension_numbers = #tpu.dot_dimension_numbers<[1], [0], [0], [1], [0, 0, 1, 1], [], []>} : vector<2x32xf32>, vector<32x2xf32>, vector<2x2xf32> -> vector<2x2xf32>
    %c0_7 = arith.constant 0 : index
    %c0_8 = arith.constant 0 : index
    %7 = vector.load %arg3[%c0_7, %c0_8] : memref<32x2xf32, #tpu.memory_space<vmem>>, vector<32x2xf32>
    %cst_9 = arith.constant dense<0.000000e+00> : vector<2x2xf32>
    %8 = tpu.matmul %4, %7, %cst_9 {dimension_numbers = #tpu.dot_dimension_numbers<[1], [0], [0], [1], [0, 0, 1, 1], [], []>} : vector<2x32xf32>, vector<32x2xf32>, vector<2x2xf32> -> vector<2x2xf32>
    %9 = arith.addf %6, %8 : vector<2x2xf32>
    %cst_10 = arith.constant 0.000000e+00 : f32
    %10 = vector.broadcast %cst_10 : f32 to vector<2x2xf32>
    %11 = arith.maximumf %9, %10 : vector<2x2xf32>
    %c0_11 = arith.constant 0 : index
    %c0_12 = arith.constant 0 : index
    %12 = vector.load %arg4[%c0_11, %c0_12] : memref<2x32xf32, #tpu.memory_space<vmem>>, vector<2x32xf32>
    %cst_13 = arith.constant dense<0.000000e+00> : vector<2x32xf32>
    %13 = tpu.matmul %11, %12, %cst_13 {dimension_numbers = #tpu.dot_dimension_numbers<[1], [0], [0], [1], [0, 0, 1, 1], [], []>} : vector<2x2xf32>, vector<2x32xf32>, vector<2x32xf32> -> vector<2x32xf32>
    %14 = arith.negf %13 : vector<2x32xf32>
    %15 = math.exp %14 : vector<2x32xf32>
    %cst_14 = arith.constant 1.000000e+00 : f32
    %16 = vector.broadcast %cst_14 : f32 to vector<2x32xf32>
    %17 = arith.addf %16, %15 : vector<2x32xf32>
    %18 = arith.divf %16, %17 : vector<2x32xf32>
    %19 = vector.shape_cast %18 : vector<2x32xf32> to vector<2x32x1xf32>
    %20 = vector.broadcast %19 : vector<2x32x1xf32> to vector<2x32x256xf32>
    %21 = arith.mulf %0, %20 : vector<2x32x256xf32>
    %c0_15 = arith.constant 0 : index
    %c0_16 = arith.constant 0 : index
    %c0_17 = arith.constant 0 : index
    %22 = vector.load %arg5[%c0_15, %c0_16, %c0_17] : memref<2x32x256xf32, #tpu.memory_space<vmem>>, vector<2x32x256xf32>
    tpu.vector_store %arg5[%c0_15, %c0_16, %c0_17], %21 {strides = array<i32>} : memref<2x32x256xf32, #tpu.memory_space<vmem>>, vector<2x32x256xf32>,
    return
  }
  func.func @transform_0(%arg0: i32) -> (i32, i32, i32) {
    %c0_i32 = arith.constant 0 : i32
    %c0_i32_0 = arith.constant 0 : i32
    %c0_i32_1 = arith.constant 0 : i32
    %c0_i32_2 = arith.constant 0 : i32
    return %c0_i32, %c0_i32_0, %c0_i32_1 : i32, i32, i32
  }
  func.func @transform_1(%arg0: i32) -> (i32, i32) {
    %c0_i32 = arith.constant 0 : i32
    %c0_i32_0 = arith.constant 0 : i32
    %c0_i32_1 = arith.constant 0 : i32
    return %c0_i32, %c0_i32_0 : i32, i32
  }
  func.func @transform_2(%arg0: i32) -> (i32, i32) {
    %c0_i32 = arith.constant 0 : i32
    %c0_i32_0 = arith.constant 0 : i32
    %c0_i32_1 = arith.constant 0 : i32
    return %c0_i32, %c0_i32_0 : i32, i32
  }
  func.func @transform_3(%arg0: i32) -> (i32, i32) {
    %c0_i32 = arith.constant 0 : i32
    %c0_i32_0 = arith.constant 0 : i32
    %c0_i32_1 = arith.constant 0 : i32
    return %c0_i32, %c0_i32_0 : i32, i32
  }
  func.func @transform_4(%arg0: i32) -> (i32, i32, i32) {
    %c0_i32 = arith.constant 0 : i32
    %c0_i32_0 = arith.constant 0 : i32
    %c0_i32_1 = arith.constant 0 : i32
    %c0_i32_2 = arith.constant 0 : i32
    return %c0_i32, %c0_i32_0, %c0_i32_1 : i32, i32, i32
  }
}

</mosaic_0001>

<llo_original>
// kernel: tpu_custom_call.1
$region0: #{tpu_custom_call.1}
  #allocation0 [shape = 'u32[]', space=smem, size = 0x4, offset = 0x4, fixed_abs, tag = 'smem constant byte address 0x4 - core index']
  #allocation1 [shape = 'u32[72,128]{1,0:T(1,128)}', space=vmem, size = 0x9000, scoped, tag = 'internal scratch']
  %s0 = inlined_call_operand.hbm [shape: f32[2,32,256], index: 0, kind: input, shape index: {}]
  %s1 = inlined_call_operand.vmem [shape: f32[32,2], index: 1, kind: input, shape index: {}]
  %s2 = inlined_call_operand.vmem [shape: f32[32,2], index: 2, kind: input, shape index: {}]
  %s3 = inlined_call_operand.vmem [shape: f32[2,32], index: 3, kind: input, shape index: {}]
  %s4 = inlined_call_operand.hbm [shape: f32[2,32,256], index: 4, kind: output, shape index: {}]
  %s5 = sld [smem:[#allocation0]]
  $region30: #{tpu_custom_call.1} parent=0
    _
  %s7 = ssub.s32 1, %s5
  %s8 = scalar_select 0, %s7, %s5
  $region1: #{tpu_custom_call.1} parent=0
    #allocation2 [shape = 'u8[65536]{0}', space=vmem, size = 0x10000, scoped, tag = 'input window, operand 0, single buffered']
    #allocation3 [shape = 's32[1]{0}', space=sflag, size = 0x4, scoped, tag = 'scoped memory for tpu_custom_call.1']
    #allocation4 [shape = 's32[1]{0}', space=sflag, size = 0x4, scoped, tag = 'scoped memory for tpu_custom_call.1']
    #allocation5 [shape = 'u8[65536]{0}', space=vmem, size = 0x10000, scoped, tag = 'output window, operand 0, single buffered']
    %9 = vsyncpa [#allocation3], 0
    %10 = vsyncpa [#allocation4], 0
    // Predicated region
    $region2: #{tpu_custom_call.1} parent=1 // pred_check
      _
    $region3: #{tpu_custom_call.1} parent=1 // pred_check_branch
      %12 = sbr.rel (0) target = $region5
    $region4: #{tpu_custom_call.1} parent=1 // pred_region
      %14 = vsyncadd [#allocation3], 0
      %s15 = sshll.u32 %s0, 4
      %s16 = int_to_ptr.hbm [resolvable:$true] %s15
      %s17 = sshll.u32 [#allocation2], 4
      %s18 = int_to_ptr.vmem [resolvable:$true] %s17
      %23 = dma.hbm_to_vmem [thread:$0]  %s16, 2048, %s18, [#allocation3], 256, 256, 16
    $region5: #{tpu_custom_call.1} parent=1 // pred_fallthru
      _
    // Predicated region
    $region6: #{tpu_custom_call.1} parent=1 // pred_check
      _
    $region7: #{tpu_custom_call.1} parent=1 // pred_check_branch
      %25 = sbr.rel (0) target = $region9
    $region8: #{tpu_custom_call.1} parent=1 // pred_region
      _
    $region9: #{tpu_custom_call.1} parent=1 // pred_fallthru
      _
    // Predicated region
    $region10: #{tpu_custom_call.1} parent=1 // pred_check
      _
    $region11: #{tpu_custom_call.1} parent=1 // pred_check_branch
      %27 = sbr.rel (0) target = $region13
    $region12: #{tpu_custom_call.1} parent=1 // pred_region
      _
    $region13: #{tpu_custom_call.1} parent=1 // pred_fallthru
      _
    // Predicated region
    $region14: #{tpu_custom_call.1} parent=1 // pred_check
      _
    $region15: #{tpu_custom_call.1} parent=1 // pred_check_branch
      %29 = sbr.rel (0) target = $region17
    $region16: #{tpu_custom_call.1} parent=1 // pred_region
      _
    $region17: #{tpu_custom_call.1} parent=1 // pred_fallthru
      _
    // Predicated region
    $region18: #{tpu_custom_call.1} parent=1 // pred_check
      _
    $region19: #{tpu_custom_call.1} parent=1 // pred_check_branch
      %31 = sbr.rel (0) target = $region21
    $region20: #{tpu_custom_call.1} parent=1 // pred_region
      %33 = dma.done [#allocation3], 2048
    $region21: #{tpu_custom_call.1} parent=1 // pred_fallthru
      _
    %v34 = vld [vmem:[#allocation2] sm:$0xff]
    %v35 = vld [vmem:[#allocation2 + $0x8] sm:$0xff]
    %v36 = vld [vmem:[#allocation2 + $0x10] sm:$0xff]
    %v37 = vld [vmem:[#allocation2 + $0x18] sm:$0xff]
    %v38 = vld [vmem:[#allocation2 + $0x20] sm:$0xff]
    %v39 = vld [vmem:[#allocation2 + $0x28] sm:$0xff]
    %v40 = vld [vmem:[#allocation2 + $0x30] sm:$0xff]
    %v41 = vld [vmem:[#allocation2 + $0x38] sm:$0xff]
    %v42 = vld [vmem:[#allocation2 + $0x40] sm:$0xff]
    %v43 = vld [vmem:[#allocation2 + $0x48] sm:$0xff]
    %v44 = vld [vmem:[#allocation2 + $0x50] sm:$0xff]
    %v45 = vld [vmem:[#allocation2 + $0x58] sm:$0xff]
    %v46 = vld [vmem:[#allocation2 + $0x60] sm:$0xff]
    %v47 = vld [vmem:[#allocation2 + $0x68] sm:$0xff]
    %v48 = vld [vmem:[#allocation2 + $0x70] sm:$0xff]
    %v49 = vld [vmem:[#allocation2 + $0x78] sm:$0xff]
    %v50 = vadd.f32 %v34, %v35
    %51 = vadd.xlane.f32.xlu0 %v50
    %v52 = vpop.xlane.xlu0 %51
    %v53 = vadd.f32 %v36, %v37
    %54 = vadd.xlane.f32.xlu0 %v53
    %v55 = vpop.xlane.xlu0 %54
    %v56 = vadd.f32 %v38, %v39
    %57 = vadd.xlane.f32.xlu0 %v56
    %v58 = vpop.xlane.xlu0 %57
    %v59 = vadd.f32 %v40, %v41
    %60 = vadd.xlane.f32.xlu0 %v59
    %v61 = vpop.xlane.xlu0 %60
    %v62 = vadd.f32 %v42, %v43
    %63 = vadd.xlane.f32.xlu0 %v62
    %v64 = vpop.xlane.xlu0 %63
    %v65 = vadd.f32 %v44, %v45
    %66 = vadd.xlane.f32.xlu0 %v65
    %v67 = vpop.xlane.xlu0 %66
    %v68 = vadd.f32 %v46, %v47
    %69 = vadd.xlane.f32.xlu0 %v68
    %v70 = vpop.xlane.xlu0 %69
    %v71 = vadd.f32 %v48, %v49
    %72 = vadd.xlane.f32.xlu0 %v71
    %v73 = vpop.xlane.xlu0 %72
    %v74 = vmul.f32 %v52, 0.00390625
    %v75 = vmul.f32 %v55, 0.00390625
    %v76 = vmul.f32 %v58, 0.00390625
    %v77 = vmul.f32 %v61, 0.00390625
    %v78 = vmul.f32 %v64, 0.00390625
    %v79 = vmul.f32 %v67, 0.00390625
    %v80 = vmul.f32 %v70, 0.00390625
    %v81 = vmul.f32 %v73, 0.00390625
    %v82 = vmax.f32 %v34, %v35
    %83 = vmax.xlane.f32.xlu0 %v82
    %v84 = vpop.xlane.xlu0 %83
    %v85 = vmax.f32 %v36, %v37
    %86 = vmax.xlane.f32.xlu0 %v85
    %v87 = vpop.xlane.xlu0 %86
    %v88 = vmax.f32 %v38, %v39
    %89 = vmax.xlane.f32.xlu0 %v88
    %v90 = vpop.xlane.xlu0 %89
    %v91 = vmax.f32 %v40, %v41
    %92 = vmax.xlane.f32.xlu0 %v91
    %v93 = vpop.xlane.xlu0 %92
    %v94 = vmax.f32 %v42, %v43
    %95 = vmax.xlane.f32.xlu0 %v94
    %v96 = vpop.xlane.xlu0 %95
    %v97 = vmax.f32 %v44, %v45
    %98 = vmax.xlane.f32.xlu0 %v97
    %v99 = vpop.xlane.xlu0 %98
    %v100 = vmax.f32 %v46, %v47
    %101 = vmax.xlane.f32.xlu0 %v100
    %v102 = vpop.xlane.xlu0 %101
    %v103 = vmax.f32 %v48, %v49
    %104 = vmax.xlane.f32.xlu0 %v103
    %v105 = vpop.xlane.xlu0 %104
    %v106 = vld [vmem:[%s1] sm:$0xff]
    %v107 = vld [vmem:[%s1 + $0x8] sm:$0xff]
    %v108 = vld [vmem:[%s1 + $0x10] sm:$0xff]
    %v109 = vld [vmem:[%s1 + $0x18] sm:$0xff]
    %v110 = vld [vmem:[%s2] sm:$0xff]
    %v111 = vld [vmem:[%s2 + $0x8] sm:$0xff]
    %v112 = vld [vmem:[%s2 + $0x10] sm:$0xff]
    %v113 = vld [vmem:[%s2 + $0x18] sm:$0xff]
    %v122 = vlaneseq
    %v123 = vand.u32 %v122, 127
    %v124 = vperm.slane %v84, %v123
    %v125 = vadd.s32 %v123, 4294967288
    %v126 = vperm.slane %v87, %v125
    %vm127 = vcmask 130112
    %v128 = vsel %vm127, %v126, %v124
    %v129 = vadd.s32 %v123, 4294967280
    %v130 = vperm.slane %v90, %v129
    %vm131 = vcmask 195712
    %v132 = vsel %vm131, %v130, %v128
    %v133 = vadd.s32 %v123, 4294967272
    %v134 = vperm.slane %v93, %v133
    %vm135 = vcmask 261312
    %v136 = vsel %vm135, %v134, %v132
    %v137 = vperm.slane %v96, %v123
    %v138 = vperm.slane %v99, %v125
    %v139 = vsel %vm127, %v138, %v137
    %v140 = vperm.slane %v102, %v129
    %v141 = vsel %vm131, %v140, %v139
    %v142 = vperm.slane %v105, %v133
    %v143 = vsel %vm135, %v142, %v141
    %vm144 = vcmask 1041409
    %v145 = vsel %vm144, %v143, %v136
    %vm146 = vcmask 261120
    %v147 = vsel %vm146, %v145, 0
    %149 = vmatpush.msra.mxu0 0.0
    %150 = vmatpush.msra.mxu0 0.0
    %151 = vmatpush.msra.mxu0 0.0
    %152 = vmatpush.msra.mxu0 0.0
    %153 = vmatpush.msra.mxu0 0.0
    %154 = vmatpush.msra.mxu0 0.0
    %155 = vmatpush.msra.mxu0 0.0
    %156 = vmatpush.msra.mxu0 0.0
    %157 = vmatpush.msra.mxu0 0.0
    %158 = vmatpush.msra.mxu0 0.0
    %159 = vmatpush.msra.mxu0 0.0
    %160 = vmatpush.msra.mxu0 0.0
    %161 = vmatpush.msra.mxu0 %v113
    %162 = vmatpush.msra.mxu0 %v112
    %163 = vmatpush.msra.mxu0 %v111
    %164 = vmatpush.msra.mxu0 %v110
    %165 = vmatmul.f32.gmra.mxu0 %v147
    %v166 = vpop.f32.mrf.mxu0
    %v167 = vadd.f32 0.0, %v166
    %168 = vdwg.mxu0
    %v177 = vperm.slane %v74, %v123
    %v178 = vperm.slane %v75, %v125
    %v179 = vsel %vm127, %v178, %v177
    %v180 = vperm.slane %v76, %v129
    %v181 = vsel %vm131, %v180, %v179
    %v182 = vperm.slane %v77, %v133
    %v183 = vsel %vm135, %v182, %v181
    %v184 = vperm.slane %v78, %v123
    %v185 = vperm.slane %v79, %v125
    %v186 = vsel %vm127, %v185, %v184
    %v187 = vperm.slane %v80, %v129
    %v188 = vsel %vm131, %v187, %v186
    %v189 = vperm.slane %v81, %v133
    %v190 = vsel %vm135, %v189, %v188
    %v191 = vsel %vm144, %v190, %v183
    %v192 = vsel %vm146, %v191, 0
    %194 = vmatpush.msra.mxu0 0.0
    %195 = vmatpush.msra.mxu0 0.0
    %196 = vmatpush.msra.mxu0 0.0
    %197 = vmatpush.msra.mxu0 0.0
    %198 = vmatpush.msra.mxu0 0.0
    %199 = vmatpush.msra.mxu0 0.0
    %200 = vmatpush.msra.mxu0 0.0
    %201 = vmatpush.msra.mxu0 0.0
    %202 = vmatpush.msra.mxu0 0.0
    %203 = vmatpush.msra.mxu0 0.0
    %204 = vmatpush.msra.mxu0 0.0
    %205 = vmatpush.msra.mxu0 0.0
    %206 = vmatpush.msra.mxu0 %v109
    %207 = vmatpush.msra.mxu0 %v108
    %208 = vmatpush.msra.mxu0 %v107
    %209 = vmatpush.msra.mxu0 %v106
    %210 = vmatmul.f32.gmra.mxu0 %v192
    %v211 = vpop.f32.mrf.mxu0
    %v212 = vadd.f32 %v167, %v211
    %213 = vdwg.mxu0
    %v214 = vmax.f32 %v212, 0.0
    %v215 = vld [vmem:[%s3] sm:$0x3]
    %vm216 = vcmask 15360
    %v218 = vsel %vm216, %v214, 0
    %vm220 = vcmask 1041408
    %v222 = vsel %vm220, %v215, 0
    %224 = vmatpush.msra.mxu0 0.0
    %225 = vmatpush.msra.mxu0 0.0
    %226 = vmatpush.msra.mxu0 0.0
    %227 = vmatpush.msra.mxu0 0.0
    %228 = vmatpush.msra.mxu0 0.0
    %229 = vmatpush.msra.mxu0 0.0
    %230 = vmatpush.msra.mxu0 0.0
    %231 = vmatpush.msra.mxu0 0.0
    %232 = vmatpush.msra.mxu0 0.0
    %233 = vmatpush.msra.mxu0 0.0
    %234 = vmatpush.msra.mxu0 0.0
    %235 = vmatpush.msra.mxu0 0.0
    %236 = vmatpush.msra.mxu0 0.0
    %237 = vmatpush.msra.mxu0 0.0
    %238 = vmatpush.msra.mxu0 0.0
    %239 = vmatpush.msra.mxu0 %v222
    %240 = vmatmul.f32.gmra.mxu0 %v218
    %v241 = vpop.f32.mrf.mxu0
    %v242 = vadd.f32 0.0, %v241
    %243 = vdwg.mxu0
    %v244 = vxor.u32 %v242, 2147483648
    %v245 = vmul.f32 %v244, 1.442695
    %v246 = vpow.pop %v245
    %v247 = vadd.f32 %v246, 1.0
    %v248 = vrcp.pop %v247
    %v249 = vmul.f32 %v247, %v248
    %v250 = vsub.f32 1.0, %v249
    %v251 = vmul.f32 %v248, %v250
    %v252 = vadd.f32 %v248, %v251
    %vm253 = vweird.f32 %v247
    %vm254 = vweird.f32 %v248
    %vm255 = vmor %vm253, %vm254
    %v256 = vsel %vm255, %v248, %v252
    %v257 = vand.u32 2147483647, %v247
    %vm258 = vcmp.eq.f32.partialorder %v257, 8.507059e+37
    %v259 = vand.u32 %v247, 2147483648
    %v260 = vor.u32 1.1754944e-38, %v259
    %v261 = vsel %vm258, %v260, %v256
    %v262 = vmul.f32 1.0, %v261
    %v263 = vperm.slane %v262, 0
    %v264 = vlaneseq
    %v265 = vshrl.u32 %v264, 7
    %267 = vset.pattern.permute.xlu0 %v265
    %268 = vperm.xlu0 %267, %v263
    %v269 = vpop.permute.xlu0 %268
    %v270 = vlaneseq
    %v271 = vshrl.u32 %v270, 7
    %v272 = vadd.s32 %v271, 8
    %273 = vset.pattern.permute.xlu0 %v272
    %274 = vperm.xlu0 %273, %v263
    %v275 = vpop.permute.xlu0 %274
    %v276 = vlaneseq
    %v277 = vshrl.u32 %v276, 7
    %v278 = vadd.s32 %v277, 16
    %279 = vset.pattern.permute.xlu0 %v278
    %280 = vperm.xlu0 %279, %v263
    %v281 = vpop.permute.xlu0 %280
    %v282 = vlaneseq
    %v283 = vshrl.u32 %v282, 7
    %v284 = vadd.s32 %v283, 24
    %285 = vset.pattern.permute.xlu0 %v284
    %286 = vperm.xlu0 %285, %v263
    %v287 = vpop.permute.xlu0 %286
    %v288 = vperm.slane %v262, 1
    %v289 = vlaneseq
    %v290 = vshrl.u32 %v289, 7
    %292 = vset.pattern.permute.xlu0 %v290
    %293 = vperm.xlu0 %292, %v288
    %v294 = vpop.permute.xlu0 %293
    %v295 = vlaneseq
    %v296 = vshrl.u32 %v295, 7
    %v297 = vadd.s32 %v296, 8
    %298 = vset.pattern.permute.xlu0 %v297
    %299 = vperm.xlu0 %298, %v288
    %v300 = vpop.permute.xlu0 %299
    %v301 = vlaneseq
    %v302 = vshrl.u32 %v301, 7
    %v303 = vadd.s32 %v302, 16
    %304 = vset.pattern.permute.xlu0 %v303
    %305 = vperm.xlu0 %304, %v288
    %v306 = vpop.permute.xlu0 %305
    %v307 = vlaneseq
    %v308 = vshrl.u32 %v307, 7
    %v309 = vadd.s32 %v308, 24
    %310 = vset.pattern.permute.xlu0 %v309
    %311 = vperm.xlu0 %310, %v288
    %v312 = vpop.permute.xlu0 %311
    %v313 = vmul.f32 %v34, %v269
    %v314 = vmul.f32 %v35, %v269
    %v315 = vmul.f32 %v36, %v275
    %v316 = vmul.f32 %v37, %v275
    %v317 = vmul.f32 %v38, %v281
    %v318 = vmul.f32 %v39, %v281
    %v319 = vmul.f32 %v40, %v287
    %v320 = vmul.f32 %v41, %v287
    %v321 = vmul.f32 %v42, %v294
    %v322 = vmul.f32 %v43, %v294
    %v323 = vmul.f32 %v44, %v300
    %v324 = vmul.f32 %v45, %v300
    %v325 = vmul.f32 %v46, %v306
    %v326 = vmul.f32 %v47, %v306
    %v327 = vmul.f32 %v48, %v312
    %v328 = vmul.f32 %v49, %v312
    %329 = vst [vmem:[#allocation5] sm:$0xff] %v313
    %330 = vst [vmem:[#allocation5 + $0x8] sm:$0xff] %v314
    %331 = vst [vmem:[#allocation5 + $0x10] sm:$0xff] %v315
    %332 = vst [vmem:[#allocation5 + $0x18] sm:$0xff] %v316
    %333 = vst [vmem:[#allocation5 + $0x20] sm:$0xff] %v317
    %334 = vst [vmem:[#allocation5 + $0x28] sm:$0xff] %v318
    %335 = vst [vmem:[#allocation5 + $0x30] sm:$0xff] %v319
    %336 = vst [vmem:[#allocation5 + $0x38] sm:$0xff] %v320
    %337 = vst [vmem:[#allocation5 + $0x40] sm:$0xff] %v321
    %338 = vst [vmem:[#allocation5 + $0x48] sm:$0xff] %v322
    %339 = vst [vmem:[#allocation5 + $0x50] sm:$0xff] %v323
    %340 = vst [vmem:[#allocation5 + $0x58] sm:$0xff] %v324
    %341 = vst [vmem:[#allocation5 + $0x60] sm:$0xff] %v325
    %342 = vst [vmem:[#allocation5 + $0x68] sm:$0xff] %v326
    %343 = vst [vmem:[#allocation5 + $0x70] sm:$0xff] %v327
    %344 = vst [vmem:[#allocation5 + $0x78] sm:$0xff] %v328
    // Predicated region
    $region22: #{tpu_custom_call.1} parent=1 // pred_check
      _
    $region23: #{tpu_custom_call.1} parent=1 // pred_check_branch
      %346 = sbr.rel (0) target = $region25
    $region24: #{tpu_custom_call.1} parent=1 // pred_region
      %348 = vsyncadd [#allocation4], 0
      %s349 = sshll.u32 [#allocation5], 4
      %s350 = int_to_ptr.vmem [resolvable:$true] %s349
      %s351 = sshll.u32 %s4, 4
      %s352 = int_to_ptr.hbm [resolvable:$true] %s351
      %357 = dma.vmem_to_hbm [thread:$0]  %s350, 2048, %s352, [#allocation4], 256, 256, 16
    $region25: #{tpu_custom_call.1} parent=1 // pred_fallthru
      _
    // Predicated region
    $region26: #{tpu_custom_call.1} parent=1 // pred_check
      _
    $region27: #{tpu_custom_call.1} parent=1 // pred_check_branch
      %359 = sbr.rel (0) target = $region29
    $region28: #{tpu_custom_call.1} parent=1 // pred_region
      %361 = dma.done [#allocation4], 2048
    $region29: #{tpu_custom_call.1} parent=1 // pred_fallthru
      _
    %362 = vsyncpa [#allocation3], 1
    %363 = vsyncpa [#allocation4], 1

</llo_original>
